<compile_context>
chip_gen: v6e
topology: v6e:2x2x1
jax: 0.10.0
libtpu: 0.0.40
codegen_flags: <defaults>
</compile_context>

<pallas_src>
import functools

import jax
import jax.numpy as jnp
from jax.experimental import pallas as pl
from jax.experimental.pallas import tpu as pltpu

HID = 128          # hidden width fixed by the module (fc1/fc2 are 128-wide)
NEG_SLOPE = 0.1    # LeakyReLU negative slope


def _round_up(x, m):
    return (x + m - 1) // m * m


def _leaky_relu(h):
    return jnp.where(h > 0, h, NEG_SLOPE * h)


# ---------------------------------------------------------------------------
# Pallas kernel: fused (h1 - h2) -> fc1 -> LeakyReLU -> fc2 -> LeakyReLU
#                -> NormalizedLinear.  One batch tile per grid step.
# ---------------------------------------------------------------------------
def _position_classifier_kernel(h1_ref, h2_ref, w1_ref, b1_ref, w2_ref, b2_ref,
                                w3_ref, b3_ref, o_ref):
    # Subtraction in f32 so small differences between near-equal encoder
    # features are preserved; only the MXU operands are cast to bf16.
    x = h1_ref[...].astype(jnp.float32) - h2_ref[...].astype(jnp.float32)

    h = jnp.dot(x.astype(jnp.bfloat16), w1_ref[...],
                preferred_element_type=jnp.float32) + b1_ref[...]
    h = _leaky_relu(h)

    h = jnp.dot(h.astype(jnp.bfloat16), w2_ref[...],
                preferred_element_type=jnp.float32) + b2_ref[...]
    h = _leaky_relu(h)

    # fc3 (NormalizedLinear): W3 arrives already normalized (grid-invariant
    # work done once in the wrapper), so this is a plain bf16 matmul + bias.
    o_ref[...] = (jnp.dot(h.astype(jnp.bfloat16), w3_ref[...],
                          preferred_element_type=jnp.float32)
                  + b3_ref[...]).astype(o_ref.dtype)


# ---------------------------------------------------------------------------
# Tiling / VMEM helpers (chip-aware)
# ---------------------------------------------------------------------------
def _vmem_capacity_bytes():
    try:
        info = pltpu.get_tpu_info()
        for attr in ("vmem_capacity_bytes", "vmem_size_bytes", "vmem_bytes"):
            cap = getattr(info, attr, None)
            if cap:
                return int(cap)
    except Exception:
        pass
    return 64 << 20   # conservative fallback (v7x per-core VMEM)


def _pick_tm(B, D, C, in_itemsize, vmem_cap):
    """Batch-tile rows: as large as the streamed-buffer budget allows,
    multiple of 8 (128 when big), and >= 2 grid steps when B permits."""
    if B <= 8:
        return max(B, 1)                               # block == full dim: legal
    stream_budget = max(vmem_cap // 4, 8 << 20)        # 32 MiB v5e/v6e, 16 MiB v7x
    per_row = (2 * (2 * D * in_itemsize + 4 * C)       # double-buffered h1/h2/out
               + 6 * D + 12 * HID + 6 * C)             # in-kernel f32/bf16 temporaries
    tm = stream_budget // max(per_row, 1)
    tm = max(8, min(1024, (tm // 8) * 8))
    if tm >= 256:
        tm = (tm // 128) * 128                         # MXU-friendly M for large tiles
    # Guarantee >= 2 grid steps so both TensorCores get work on dual-TC chips.
    half = max(8, _round_up((B + 1) // 2, 8))
    return min(tm, half)


# ---------------------------------------------------------------------------
# Wrapper
# ---------------------------------------------------------------------------
def position_classifier_forward(h1, h2, params):
    """params = (w1, b1, w2, b2, w3, b3) with weights in (in, out) layout
    (transpose of PyTorch's (out, in))."""
    w1, b1, w2, b2, w3, b3 = params
    D = w1.shape[0]
    C = w3.shape[1]

    # Flatten the batch only; keep the caller's dtype (no HBM upcast copy).
    h1 = h1.reshape(-1, D)
    h2 = h2.reshape(-1, D)
    B = h1.shape[0]

    # NormalizedLinear: PyTorch normalizes weight (out, in) over dim=0 (the
    # out axis).  In (in, out) layout that is a per-row norm.  Grid-invariant,
    # so do it once here on the tiny (HID, C) matrix.
    w3f = w3.astype(jnp.float32)
    w3n = w3f * jax.lax.rsqrt(jnp.sum(w3f * w3f, axis=1, keepdims=True))

    # Weights as bf16 MXU operands (f32 accumulation in-kernel); biases f32.
    w1b = w1.astype(jnp.bfloat16)
    w2b = w2.astype(jnp.bfloat16)
    w3b = w3n.astype(jnp.bfloat16)
    b1r = b1.astype(jnp.float32).reshape(1, HID)
    b2r = b2.astype(jnp.float32).reshape(1, HID)
    b3r = b3.astype(jnp.float32).reshape(1, C)

    vmem_cap = _vmem_capacity_bytes()
    in_itemsize = jnp.dtype(h1.dtype).itemsize
    TM = _pick_tm(B, D, C, in_itemsize, vmem_cap)
    grid = (pl.cdiv(B, TM),)   # ragged last tile handled by Pallas edge masking

    cost = pl.CostEstimate(
        flops=2 * B * (D * HID + HID * HID + HID * C),
        transcendentals=0,
        bytes_accessed=(in_itemsize * 2 * B * D + 4 * B * C
                        + 2 * (D * HID + HID * HID + HID * C)
                        + 4 * (2 * HID + C)),
    )

    out = pl.pallas_call(
        _position_classifier_kernel,
        out_shape=jax.ShapeDtypeStruct((B, C), jnp.float32),
        grid_spec=pltpu.PrefetchScalarGridSpec(
            num_scalar_prefetch=0,
            grid=grid,
            in_specs=[
                pl.BlockSpec((TM, D), lambda i: (i, 0)),     # h1 tile (streamed)
                pl.BlockSpec((TM, D), lambda i: (i, 0)),     # h2 tile (streamed)
                pl.BlockSpec((D, HID), lambda i: (0, 0)),    # W1 (resident, bf16)
                pl.BlockSpec((1, HID), lambda i: (0, 0)),    # b1 (f32)
                pl.BlockSpec((HID, HID), lambda i: (0, 0)),  # W2 (resident, bf16)
                pl.BlockSpec((1, HID), lambda i: (0, 0)),    # b2 (f32)
                pl.BlockSpec((HID, C), lambda i: (0, 0)),    # W3 normalized (bf16)
                pl.BlockSpec((1, C), lambda i: (0, 0)),      # b3 (f32)
            ],
            out_specs=pl.BlockSpec((TM, C), lambda i: (i, 0)),
        ),
        compiler_params=pltpu.CompilerParams(
            dimension_semantics=("parallel",),
            vmem_limit_bytes=min(max(vmem_cap // 2, 32 << 20), 64 << 20)),
        cost_estimate=cost,
    )(h1, h2, w1b, b1r, w2b, b2r, w3b, b3r)

    return out   # exact (B, C); no post-kernel slice


# ---------------------------------------------------------------------------
# Parameters / pure-JAX reference
# ---------------------------------------------------------------------------
def init_params(key, D, class_num):
    """Deterministic synthetic params with the module shapes, (in,out) layout."""
    ks = jax.random.split(key, 6)

    def uni(k, shape, fan_in):
        bound = 1.0 / jnp.sqrt(jnp.float32(fan_in))
        return jax.random.uniform(k, shape, jnp.float32, -bound, bound)

    w1 = uni(ks[0], (D, HID), D)
    b1 = uni(ks[1], (HID,), D)
    w2 = uni(ks[2], (HID, HID), HID)
    b2 = uni(ks[3], (HID,), HID)
    w3 = uni(ks[4], (HID, class_num), HID)
    b3 = uni(ks[5], (class_num,), HID)
    return (w1, b1, w2, b2, w3, b3)


def reference_forward(h1, h2, params):
    w1, b1, w2, b2, w3, b3 = params
    D = w1.shape[0]
    x = h1.reshape(-1, D).astype(jnp.float32) - h2.reshape(-1, D).astype(jnp.float32)
    P = jax.lax.Precision.HIGHEST
    h = _leaky_relu(jnp.dot(x, w1, precision=P) + b1)
    h = _leaky_relu(jnp.dot(h, w2, precision=P) + b2)
    w3n = w3 / jnp.sqrt(jnp.sum(w3 * w3, axis=1, keepdims=True))
    return jnp.dot(h, w3n, precision=P) + b3


if __name__ == "__main__":
    key = jax.random.PRNGKey(0)
    k1, k2, kp = jax.random.split(key, 3)

    K, D, class_num = 9, 32, 8
    # Encoder features for two patch sets; forward views them as (-1, D).
    h1 = jax.random.normal(k1, (2, 8, D), jnp.float32)
    h2 = jax.random.normal(k2, (2, 8, D), jnp.float32)

    params = init_params(kp, D, class_num)

    fwd = jax.jit(functools.partial(position_classifier_forward, params=params))
    out = jax.block_until_ready(fwd(h1, h2))

    assert out.shape == (16, class_num), out.shape
    assert out.dtype == jnp.float32

    ref = reference_forward(h1, h2, params)
    max_err = float(jnp.max(jnp.abs(out - ref)))
    assert jnp.allclose(out, ref, rtol=2e-2, atol=2e-2), max_err

    print("KERNEL_OK")
</pallas_src>

<mosaic_0001>
module attributes {stable_mosaic.version = 11 : i64} {
  func.func @_position_classifier_kernel(%arg0: i32, %arg1: memref<8x32xf32, #tpu.memory_space<vmem>>, %arg2: memref<8x32xf32, #tpu.memory_space<vmem>>, %arg3: memref<32x128xbf16, #tpu.memory_space<vmem>>, %arg4: memref<1x128xf32, #tpu.memory_space<vmem>>, %arg5: memref<128x128xbf16, #tpu.memory_space<vmem>>, %arg6: memref<1x128xf32, #tpu.memory_space<vmem>>, %arg7: memref<128x8xbf16, #tpu.memory_space<vmem>>, %arg8: memref<1x8xf32, #tpu.memory_space<vmem>>, %arg9: memref<8x8xf32, #tpu.memory_space<vmem>>) attributes {dimension_semantics = [#tpu.dimension_semantics<parallel>], iteration_bounds = array<i64: 2>, scalar_prefetch = 0 : i64, scratch_operands = 0 : i64, tpu.core_type = #tpu.core_type<tc>, window_params = [{transform_indices = @transform_0, window_bounds = array<i64: 8, 32>}, {transform_indices = @transform_1, window_bounds = array<i64: 8, 32>}, {pipeline_mode = #tpu.pipeline_mode<synchronous>, transform_indices = @transform_2, window_bounds = array<i64: 32, 128>}, {pipeline_mode = #tpu.pipeline_mode<synchronous>, transform_indices = @transform_3, window_bounds = array<i64: 1, 128>}, {pipeline_mode = #tpu.pipeline_mode<synchronous>, transform_indices = @transform_4, window_bounds = array<i64: 128, 128>}, {pipeline_mode = #tpu.pipeline_mode<synchronous>, transform_indices = @transform_5, window_bounds = array<i64: 1, 128>}, {pipeline_mode = #tpu.pipeline_mode<synchronous>, transform_indices = @transform_6, window_bounds = array<i64: 128, 8>}, {pipeline_mode = #tpu.pipeline_mode<synchronous>, transform_indices = @transform_7, window_bounds = array<i64: 1, 8>}, {transform_indices = @transform_8, window_bounds = array<i64: 8, 8>}]} {
    %c0 = arith.constant 0 : index
    %c0_0 = arith.constant 0 : index
    %0 = vector.load %arg1[%c0, %c0_0] : memref<8x32xf32, #tpu.memory_space<vmem>>, vector<8x32xf32>
    %c0_1 = arith.constant 0 : index
    %c0_2 = arith.constant 0 : index
    %1 = vector.load %arg2[%c0_1, %c0_2] : memref<8x32xf32, #tpu.memory_space<vmem>>, vector<8x32xf32>
    %2 = arith.subf %0, %1 : vector<8x32xf32>
    %3 = arith.truncf %2 : vector<8x32xf32> to vector<8x32xbf16>
    %c0_3 = arith.constant 0 : index
    %c0_4 = arith.constant 0 : index
    %4 = vector.load %arg3[%c0_3, %c0_4] : memref<32x128xbf16, #tpu.memory_space<vmem>>, vector<32x128xbf16>
    %cst = arith.constant dense<0.000000e+00> : vector<8x128xf32>
    %5 = tpu.matmul %3, %4, %cst {dimension_numbers = #tpu.dot_dimension_numbers<[1], [0], [0], [1], [0, 0, 1, 1], [], []>} : vector<8x32xbf16>, vector<32x128xbf16>, vector<8x128xf32> -> vector<8x128xf32>
    %c0_5 = arith.constant 0 : index
    %c0_6 = arith.constant 0 : index
    %6 = vector.load %arg4[%c0_5, %c0_6] : memref<1x128xf32, #tpu.memory_space<vmem>>, vector<1x128xf32>
    %7 = vector.broadcast %6 : vector<1x128xf32> to vector<8x128xf32>
    %8 = arith.addf %5, %7 : vector<8x128xf32>
    %cst_7 = arith.constant 0.000000e+00 : f32
    %9 = vector.broadcast %cst_7 : f32 to vector<8x128xf32>
    %10 = arith.cmpf ogt, %8, %9 : vector<8x128xf32>
    %cst_8 = arith.constant 1.000000e-01 : f32
    %11 = vector.broadcast %cst_8 : f32 to vector<8x128xf32>
    %12 = arith.mulf %11, %8 : vector<8x128xf32>
    %13 = arith.select %10, %8, %12 : vector<8x128xi1>, vector<8x128xf32>
    %14 = arith.truncf %13 : vector<8x128xf32> to vector<8x128xbf16>
    %c0_9 = arith.constant 0 : index
    %c0_10 = arith.constant 0 : index
    %15 = vector.load %arg5[%c0_9, %c0_10] : memref<128x128xbf16, #tpu.memory_space<vmem>>, vector<128x128xbf16>
    %cst_11 = arith.constant dense<0.000000e+00> : vector<8x128xf32>
    %16 = tpu.matmul %14, %15, %cst_11 {dimension_numbers = #tpu.dot_dimension_numbers<[1], [0], [0], [1], [0, 0, 1, 1], [], []>} : vector<8x128xbf16>, vector<128x128xbf16>, vector<8x128xf32> -> vector<8x128xf32>
    %c0_12 = arith.constant 0 : index
    %c0_13 = arith.constant 0 : index
    %17 = vector.load %arg6[%c0_12, %c0_13] : memref<1x128xf32, #tpu.memory_space<vmem>>, vector<1x128xf32>
    %18 = vector.broadcast %17 : vector<1x128xf32> to vector<8x128xf32>
    %19 = arith.addf %16, %18 : vector<8x128xf32>
    %cst_14 = arith.constant 0.000000e+00 : f32
    %20 = vector.broadcast %cst_14 : f32 to vector<8x128xf32>
    %21 = arith.cmpf ogt, %19, %20 : vector<8x128xf32>
    %cst_15 = arith.constant 1.000000e-01 : f32
    %22 = vector.broadcast %cst_15 : f32 to vector<8x128xf32>
    %23 = arith.mulf %22, %19 : vector<8x128xf32>
    %24 = arith.select %21, %19, %23 : vector<8x128xi1>, vector<8x128xf32>
    %25 = arith.truncf %24 : vector<8x128xf32> to vector<8x128xbf16>
    %c0_16 = arith.constant 0 : index
    %c0_17 = arith.constant 0 : index
    %26 = vector.load %arg7[%c0_16, %c0_17] : memref<128x8xbf16, #tpu.memory_space<vmem>>, vector<128x8xbf16>
    %cst_18 = arith.constant dense<0.000000e+00> : vector<8x8xf32>
    %27 = tpu.matmul %25, %26, %cst_18 {dimension_numbers = #tpu.dot_dimension_numbers<[1], [0], [0], [1], [0, 0, 1, 1], [], []>} : vector<8x128xbf16>, vector<128x8xbf16>, vector<8x8xf32> -> vector<8x8xf32>
    %c0_19 = arith.constant 0 : index
    %c0_20 = arith.constant 0 : index
    %28 = vector.load %arg8[%c0_19, %c0_20] : memref<1x8xf32, #tpu.memory_space<vmem>>, vector<1x8xf32>
    %29 = vector.broadcast %28 : vector<1x8xf32> to vector<8x8xf32>
    %30 = arith.addf %27, %29 : vector<8x8xf32>
    %c0_21 = arith.constant 0 : index
    %c0_22 = arith.constant 0 : index
    %31 = vector.load %arg9[%c0_21, %c0_22] : memref<8x8xf32, #tpu.memory_space<vmem>>, vector<8x8xf32>
    tpu.vector_store %arg9[%c0_21, %c0_22], %30 {strides = array<i32>} : memref<8x8xf32, #tpu.memory_space<vmem>>, vector<8x8xf32>,
    return
  }
  func.func @transform_0(%arg0: i32) -> (i32, i32) {
    %c0_i32 = arith.constant 0 : i32
    %c0_i32_0 = arith.constant 0 : i32
    return %arg0, %c0_i32 : i32, i32
  }
  func.func @transform_1(%arg0: i32) -> (i32, i32) {
    %c0_i32 = arith.constant 0 : i32
    %c0_i32_0 = arith.constant 0 : i32
    return %arg0, %c0_i32 : i32, i32
  }
  func.func @transform_2(%arg0: i32) -> (i32, i32) {
    %c0_i32 = arith.constant 0 : i32
    %c0_i32_0 = arith.constant 0 : i32
    %c0_i32_1 = arith.constant 0 : i32
    return %c0_i32, %c0_i32_0 : i32, i32
  }
  func.func @transform_3(%arg0: i32) -> (i32, i32) {
    %c0_i32 = arith.constant 0 : i32
    %c0_i32_0 = arith.constant 0 : i32
    %c0_i32_1 = arith.constant 0 : i32
    return %c0_i32, %c0_i32_0 : i32, i32
  }
  func.func @transform_4(%arg0: i32) -> (i32, i32) {
    %c0_i32 = arith.constant 0 : i32
    %c0_i32_0 = arith.constant 0 : i32
    %c0_i32_1 = arith.constant 0 : i32
    return %c0_i32, %c0_i32_0 : i32, i32
  }
  func.func @transform_5(%arg0: i32) -> (i32, i32) {
    %c0_i32 = arith.constant 0 : i32
    %c0_i32_0 = arith.constant 0 : i32
    %c0_i32_1 = arith.constant 0 : i32
    return %c0_i32, %c0_i32_0 : i32, i32
  }
  func.func @transform_6(%arg0: i32) -> (i32, i32) {
    %c0_i32 = arith.constant 0 : i32
    %c0_i32_0 = arith.constant 0 : i32
    %c0_i32_1 = arith.constant 0 : i32
    return %c0_i32, %c0_i32_0 : i32, i32
  }
  func.func @transform_7(%arg0: i32) -> (i32, i32) {
    %c0_i32 = arith.constant 0 : i32
    %c0_i32_0 = arith.constant 0 : i32
    %c0_i32_1 = arith.constant 0 : i32
    return %c0_i32, %c0_i32_0 : i32, i32
  }
  func.func @transform_8(%arg0: i32) -> (i32, i32) {
    %c0_i32 = arith.constant 0 : i32
    %c0_i32_0 = arith.constant 0 : i32
    return %arg0, %c0_i32 : i32, i32
  }
}

</mosaic_0001>

<llo_original>
// kernel: position_classifier_forward.1
$region0: #{position_classifier_forward.1}
  #allocation0 [shape = 'u32[]', space=smem, size = 0x4, offset = 0x4, fixed_abs, tag = 'smem constant byte address 0x4 - core index']
  #allocation1 [shape = 'u32[144,128]{1,0:T(1,128)}', space=vmem, size = 0x12000, scoped, tag = 'internal scratch']
  %s0 = inlined_call_operand.hbm [shape: f32[16,32], index: 0, kind: input, shape index: {}]
  %s1 = inlined_call_operand.hbm [shape: f32[16,32], index: 1, kind: input, shape index: {}]
  %s2 = inlined_call_operand.hbm [shape: bf16[32,128], index: 2, kind: input, shape index: {}]
  %s3 = inlined_call_operand.vmem [shape: f32[1,128], index: 3, kind: input, shape index: {}]
  %s4 = inlined_call_operand.hbm [shape: bf16[128,128], index: 4, kind: input, shape index: {}]
  %s5 = inlined_call_operand.vmem [shape: f32[1,128], index: 5, kind: input, shape index: {}]
  %s6 = inlined_call_operand.hbm [shape: bf16[128,8], index: 6, kind: input, shape index: {}]
  %s7 = inlined_call_operand.vmem [shape: f32[1,8], index: 7, kind: input, shape index: {}]
  %s8 = inlined_call_operand.vmem [shape: f32[16,8], index: 8, kind: output, shape index: {}]
  %s9 = sld [smem:[#allocation0]]
  $region85: #{position_classifier_forward.1} parent=0
    _
  %s11 = ssub.s32 1, %s9
  %s12 = scalar_select 0, %s11, %s9
  $region1: #{position_classifier_forward.1} parent=0
    #allocation2 [shape = 'u8[8192]{0}', space=vmem, size = 0x2000, scoped, tag = 'input window, operand 0']
    #allocation3 [shape = 's32[2]{0}', space=sflag, size = 0x8, scoped, tag = 'scoped memory for position_classifier_forward.1']
    #allocation4 [shape = 'u8[8192]{0}', space=vmem, size = 0x2000, scoped, tag = 'input window, operand 1']
    #allocation5 [shape = 's32[2]{0}', space=sflag, size = 0x8, scoped, tag = 'scoped memory for position_classifier_forward.1']
    #allocation6 [shape = 'u8[8192]{0}', space=vmem, size = 0x2000, scoped, tag = 'input window, operand 2, single buffered']
    #allocation7 [shape = 'u8[32768]{0}', space=vmem, size = 0x8000, scoped, tag = 'input window, operand 4, single buffered']
    #allocation8 [shape = 's32[1]{0}', space=sflag, size = 0x4, scoped, tag = 'scoped memory for position_classifier_forward.1']
    #allocation9 [shape = 'u8[32768]{0}', space=vmem, size = 0x8000, scoped, tag = 'input window, operand 6, single buffered']
    %13 = vsyncpa [#allocation3], 0
    %s14 = scalar_lea.sflag [#allocation3], 1
    %15 = vsyncpa %s14, 0
    %16 = vsyncpa [#allocation5], 0
    %s17 = scalar_lea.sflag [#allocation5], 1
    %18 = vsyncpa %s17, 0
    %19 = vsyncpa [#allocation8], 0
    loop: start=0, step=1, limit=4
    $region2: #{position_classifier_forward.1} parent=1 // loop_pre_header
      _
    $region3: #{position_classifier_forward.1} parent=1 // loop_header
      %s21 = sphi 0, %s25
      %p22 = scmp.ge.s32.totalorder %s21, 4
      %s31 = sphi 0, %s33
      %s34 = sphi 0, %s31
      %s35 = sphi 0, %s34
      %s51 = sphi 0, %s35
      %s57 = sphi 0, %s59
      %s60 = sphi 0, %s57
      %s61 = sphi 0, %s60
      %s77 = sphi 0, %s61
      %s81 = sphi 0, %s81
      %s83 = sphi 0, %s81
      %s84 = sphi 0, %s83
      %s98 = sphi 0, %s84
      %s102 = sphi 0, %s102
      %s104 = sphi 0, %s102
      %s105 = sphi 0, %s104
      %s119 = sphi 0, %s105
      %s123 = sphi 0, %s123
      %s125 = sphi 0, %s123
      %s126 = sphi 0, %s125
      %s140 = sphi 0, %s126
      %s144 = sphi 0, %s144
      %s146 = sphi 0, %s144
      %s147 = sphi 0, %s146
      %s161 = sphi 0, %s147
      %s165 = sphi 0, %s165
      %s167 = sphi 0, %s165
      %s168 = sphi 0, %s167
      %s182 = sphi 0, %s168
      %s186 = sphi 0, %s186
      %s188 = sphi 0, %s186
      %s189 = sphi 0, %s188
      %s203 = sphi 0, %s189
      %s209 = sphi 0, %s211
      %s212 = sphi 0, %s209
      %s213 = sphi 0, %s212
      %s229 = sphi 0, %s213
    $region4: #{position_classifier_forward.1} parent=1 // loop_header_branch
      %24 = sbr.rel (%p22) target = $region8
    $region5: #{position_classifier_forward.1} parent=1 // loop_body
      %s26 = ssub.s32 %s21, 1
      %s27 = ssub.s32 %s21, 2
      %s28 = sadd.s32 %s21, 1
      %s29 = ssub.s32 %s21, %s28
      %p30 = scmp.eq.s32.totalorder %s29, 0
      %s32 = sadd.s32 %s31, 1
      %s33 = scalar_select %p30, %s31, %s32
      %p36 = pneg %p30
      %p37 = scmp.eq.s32.totalorder %s21, 1
      %p38 = por %p36, %p37
      %p39 = scmp.ne.s32.totalorder %s31, %s34
      %p40 = scmp.eq.s32.totalorder %s21, 0
      %p41 = por %p39, %p40
      %p42 = scmp.ne.s32.totalorder %s31, %s34
      %p43 = scmp.eq.s32.totalorder %s26, 1
      %p44 = por %p42, %p43
      %p45 = scmp.ne.s32.totalorder %s34, %s35
      %p46 = scmp.eq.s32.totalorder %s26, 0
      %p47 = por %p45, %p46
      %p48 = scmp.ne.s32.totalorder %s34, %s35
      %p49 = scmp.eq.s32.totalorder %s27, 1
      %p50 = por %p48, %p49
      %p52 = scmp.ne.s32.totalorder %s35, %s51
      %p53 = scmp.eq.s32.totalorder %s27, 0
      %p54 = por %p52, %p53
      %s55 = ssub.s32 %s21, %s28
      %p56 = scmp.eq.s32.totalorder %s55, 0
      %s58 = sadd.s32 %s57, 1
      %s59 = scalar_select %p56, %s57, %s58
      %p62 = pneg %p56
      %p63 = scmp.eq.s32.totalorder %s21, 1
      %p64 = por %p62, %p63
      %p65 = scmp.ne.s32.totalorder %s57, %s60
      %p66 = scmp.eq.s32.totalorder %s21, 0
      %p67 = por %p65, %p66
      %p68 = scmp.ne.s32.totalorder %s57, %s60
      %p69 = scmp.eq.s32.totalorder %s26, 1
      %p70 = por %p68, %p69
      %p71 = scmp.ne.s32.totalorder %s60, %s61
      %p72 = scmp.eq.s32.totalorder %s26, 0
      %p73 = por %p71, %p72
      %p74 = scmp.ne.s32.totalorder %s60, %s61
      %p75 = scmp.eq.s32.totalorder %s27, 1
      %p76 = por %p74, %p75
      %p78 = scmp.ne.s32.totalorder %s61, %s77
      %p79 = scmp.eq.s32.totalorder %s27, 0
      %p80 = por %p78, %p79
      %s82 = sadd.s32 %s81, 1
      %p85 = scmp.eq.s32.totalorder %s21, 1
      %p86 = scmp.ne.s32.totalorder %s81, %s83
      %p87 = scmp.eq.s32.totalorder %s21, 0
      %p88 = por %p86, %p87
      %p89 = scmp.ne.s32.totalorder %s81, %s83
      %p90 = scmp.eq.s32.totalorder %s26, 1
      %p91 = por %p89, %p90
      %p92 = scmp.ne.s32.totalorder %s83, %s84
      %p93 = scmp.eq.s32.totalorder %s26, 0
      %p94 = por %p92, %p93
      %p95 = scmp.ne.s32.totalorder %s83, %s84
      %p96 = scmp.eq.s32.totalorder %s27, 1
      %p97 = por %p95, %p96
      %p99 = scmp.ne.s32.totalorder %s84, %s98
      %p100 = scmp.eq.s32.totalorder %s27, 0
      %p101 = por %p99, %p100
      %s103 = sadd.s32 %s102, 1
      %p106 = scmp.eq.s32.totalorder %s21, 1
      %p107 = scmp.ne.s32.totalorder %s102, %s104
      %p108 = scmp.eq.s32.totalorder %s21, 0
      %p109 = por %p107, %p108
      %p110 = scmp.ne.s32.totalorder %s102, %s104
      %p111 = scmp.eq.s32.totalorder %s26, 1
      %p112 = por %p110, %p111
      %p113 = scmp.ne.s32.totalorder %s104, %s105
      %p114 = scmp.eq.s32.totalorder %s26, 0
      %p115 = por %p113, %p114
      %p116 = scmp.ne.s32.totalorder %s104, %s105
      %p117 = scmp.eq.s32.totalorder %s27, 1
      %p118 = por %p116, %p117
      %p120 = scmp.ne.s32.totalorder %s105, %s119
      %p121 = scmp.eq.s32.totalorder %s27, 0
      %p122 = por %p120, %p121
      %s124 = sadd.s32 %s123, 1
      %p127 = scmp.eq.s32.totalorder %s21, 1
      %p128 = scmp.ne.s32.totalorder %s123, %s125
      %p129 = scmp.eq.s32.totalorder %s21, 0
      %p130 = por %p128, %p129
      %p131 = scmp.ne.s32.totalorder %s123, %s125
      %p132 = scmp.eq.s32.totalorder %s26, 1
      %p133 = por %p131, %p132
      %p134 = scmp.ne.s32.totalorder %s125, %s126
      %p135 = scmp.eq.s32.totalorder %s26, 0
      %p136 = por %p134, %p135
      %p137 = scmp.ne.s32.totalorder %s125, %s126
      %p138 = scmp.eq.s32.totalorder %s27, 1
      %p139 = por %p137, %p138
      %p141 = scmp.ne.s32.totalorder %s126, %s140
      %p142 = scmp.eq.s32.totalorder %s27, 0
      %p143 = por %p141, %p142
      %s145 = sadd.s32 %s144, 1
      %p148 = scmp.eq.s32.totalorder %s21, 1
      %p149 = scmp.ne.s32.totalorder %s144, %s146
      %p150 = scmp.eq.s32.totalorder %s21, 0
      %p151 = por %p149, %p150
      %p152 = scmp.ne.s32.totalorder %s144, %s146
      %p153 = scmp.eq.s32.totalorder %s26, 1
      %p154 = por %p152, %p153
      %p155 = scmp.ne.s32.totalorder %s146, %s147
      %p156 = scmp.eq.s32.totalorder %s26, 0
      %p157 = por %p155, %p156
      %p158 = scmp.ne.s32.totalorder %s146, %s147
      %p159 = scmp.eq.s32.totalorder %s27, 1
      %p160 = por %p158, %p159
      %p162 = scmp.ne.s32.totalorder %s147, %s161
      %p163 = scmp.eq.s32.totalorder %s27, 0
      %p164 = por %p162, %p163
      %s166 = sadd.s32 %s165, 1
      %p169 = scmp.eq.s32.totalorder %s21, 1
      %p170 = scmp.ne.s32.totalorder %s165, %s167
      %p171 = scmp.eq.s32.totalorder %s21, 0
      %p172 = por %p170, %p171
      %p173 = scmp.ne.s32.totalorder %s165, %s167
      %p174 = scmp.eq.s32.totalorder %s26, 1
      %p175 = por %p173, %p174
      %p176 = scmp.ne.s32.totalorder %s167, %s168
      %p177 = scmp.eq.s32.totalorder %s26, 0
      %p178 = por %p176, %p177
      %p179 = scmp.ne.s32.totalorder %s167, %s168
      %p180 = scmp.eq.s32.totalorder %s27, 1
      %p181 = por %p179, %p180
      %p183 = scmp.ne.s32.totalorder %s168, %s182
      %p184 = scmp.eq.s32.totalorder %s27, 0
      %p185 = por %p183, %p184
      %s187 = sadd.s32 %s186, 1
      %p190 = scmp.eq.s32.totalorder %s21, 1
      %p191 = scmp.ne.s32.totalorder %s186, %s188
      %p192 = scmp.eq.s32.totalorder %s21, 0
      %p193 = por %p191, %p192
      %p194 = scmp.ne.s32.totalorder %s186, %s188
      %p195 = scmp.eq.s32.totalorder %s26, 1
      %p196 = por %p194, %p195
      %p197 = scmp.ne.s32.totalorder %s188, %s189
      %p198 = scmp.eq.s32.totalorder %s26, 0
      %p199 = por %p197, %p198
      %p200 = scmp.ne.s32.totalorder %s188, %s189
      %p201 = scmp.eq.s32.totalorder %s27, 1
      %p202 = por %p200, %p201
      %p204 = scmp.ne.s32.totalorder %s189, %s203
      %p205 = scmp.eq.s32.totalorder %s27, 0
      %p206 = por %p204, %p205
      %s207 = ssub.s32 %s21, %s28
      %p208 = scmp.eq.s32.totalorder %s207, 0
      %s210 = sadd.s32 %s209, 1
      %s211 = scalar_select %p208, %s209, %s210
      %p214 = pneg %p208
      %p215 = scmp.eq.s32.totalorder %s21, 1
      %p216 = por %p214, %p215
      %p217 = scmp.ne.s32.totalorder %s209, %s212
      %p218 = scmp.eq.s32.totalorder %s21, 0
      %p219 = por %p217, %p218
      %p220 = scmp.ne.s32.totalorder %s209, %s212
      %p221 = scmp.eq.s32.totalorder %s26, 1
      %p222 = por %p220, %p221
      %p223 = scmp.ne.s32.totalorder %s212, %s213
      %p224 = scmp.eq.s32.totalorder %s26, 0
      %p225 = por %p223, %p224
      %p226 = scmp.ne.s32.totalorder %s212, %s213
      %p227 = scmp.eq.s32.totalorder %s27, 1
      %p228 = por %p226, %p227
      %p230 = scmp.ne.s32.totalorder %s213, %s229
      %p231 = scmp.eq.s32.totalorder %s27, 0
      %p232 = por %p230, %p231
      %p233 = scmp.le.s32.totalorder 1, %s21
      %p234 = scmp.lt.s32.totalorder %s21, 3
      %p235 = pnand %p233, %p234
      %p236 = pneg %p235
      // Predicated region
      $region9: #{position_classifier_forward.1} parent=5 // pred_check
        _
      $region10: #{position_classifier_forward.1} parent=5 // pred_check_branch
        %238 = sbr.rel (%p235) target = $region12
      $region11: #{position_classifier_forward.1} parent=5 // pred_region
        %s239 = ssub.s32 %s21, 1
        // Predicated region
        $region13: #{position_classifier_forward.1} parent=11 // pred_check
          %p240 = pneg %p94
        $region14: #{position_classifier_forward.1} parent=11 // pred_check_branch
          %242 = sbr.rel (%p240) target = $region16
        $region15: #{position_classifier_forward.1} parent=11 // pred_region
          %s244 = ssub.s32 256, 256
          %245 = vsyncadd [#allocation5], %s244
          %s246 = sshll.u32 [#allocation6], 4
          %s247 = int_to_ptr.vmem [resolvable:$true] %s246
          %252 = dma.hbm_to_vmem [thread:$0]  %s2, 256, %s247, [#allocation5], 64, 64, 4
        $region16: #{position_classifier_forward.1} parent=11 // pred_fallthru
          _
        // Predicated region
        $region17: #{position_classifier_forward.1} parent=11 // pred_check
          %p253 = pneg %p115
        $region18: #{position_classifier_forward.1} parent=11 // pred_check_branch
          %255 = sbr.rel (%p253) target = $region20
        $region19: #{position_classifier_forward.1} parent=11 // pred_region
          _
        $region20: #{position_classifier_forward.1} parent=11 // pred_fallthru
          _
        // Predicated region
        $region21: #{position_classifier_forward.1} parent=11 // pred_check
          %p256 = pneg %p136
        $region22: #{position_classifier_forward.1} parent=11 // pred_check_branch
          %258 = sbr.rel (%p256) target = $region24
        $region23: #{position_classifier_forward.1} parent=11 // pred_region
          %s260 = ssub.s32 1024, 1024
          %261 = vsyncadd [#allocation8], %s260
          %s262 = sshll.u32 [#allocation7], 4
          %s263 = int_to_ptr.vmem [resolvable:$true] %s262
          %268 = dma.hbm_to_vmem [thread:$0]  %s4, 1024, %s263, [#allocation8], 64, 64, 4
        $region24: #{position_classifier_forward.1} parent=11 // pred_fallthru
          _
        // Predicated region
        $region25: #{position_classifier_forward.1} parent=11 // pred_check
          %p269 = pneg %p157
        $region26: #{position_classifier_forward.1} parent=11 // pred_check_branch
          %271 = sbr.rel (%p269) target = $region28
        $region27: #{position_classifier_forward.1} parent=11 // pred_region
          _
        $region28: #{position_classifier_forward.1} parent=11 // pred_fallthru
          _
        // Predicated region
        $region29: #{position_classifier_forward.1} parent=11 // pred_check
          %p272 = pneg %p178
        $region30: #{position_classifier_forward.1} parent=11 // pred_check_branch
          %274 = sbr.rel (%p272) target = $region32
        $region31: #{position_classifier_forward.1} parent=11 // pred_region
          %s276 = ssub.s32 1024, 1024
          %277 = vsyncadd [#allocation8], %s276
          %s278 = sshll.u32 [#allocation9], 4
          %s279 = int_to_ptr.vmem [resolvable:$true] %s278
          %284 = dma.hbm_to_vmem [thread:$0]  %s6, 1024, %s279, [#allocation8], 64, 64, 4
        $region32: #{position_classifier_forward.1} parent=11 // pred_fallthru
          _
        // Predicated region
        $region33: #{position_classifier_forward.1} parent=11 // pred_check
          %p285 = pneg %p199
        $region34: #{position_classifier_forward.1} parent=11 // pred_check_branch
          %287 = sbr.rel (%p285) target = $region36
        $region35: #{position_classifier_forward.1} parent=11 // pred_region
          _
        $region36: #{position_classifier_forward.1} parent=11 // pred_fallthru
          _
      $region12: #{position_classifier_forward.1} parent=5 // pred_fallthru
        _
      %p288 = scmp.lt.s32.totalorder %s21, 2
      // Predicated region
      $region37: #{position_classifier_forward.1} parent=5 // pred_check
        %p289 = pneg %p288
      $region38: #{position_classifier_forward.1} parent=5 // pred_check_branch
        %291 = sbr.rel (%p289) target = $region40
      $region39: #{position_classifier_forward.1} parent=5 // pred_region
        // Predicated region
        $region41: #{position_classifier_forward.1} parent=39 // pred_check
          %p292 = pneg %p41
        $region42: #{position_classifier_forward.1} parent=39 // pred_check_branch
          %294 = sbr.rel (%p292) target = $region44
        $region43: #{position_classifier_forward.1} parent=39 // pred_region
          %s295 = sand.u32 %s31, 1
          %s296 = scalar_lea.sflag [#allocation3], %s295
          %s297 = sand.u32 %s31, 1
          %s298 = smul.addr %s297, 8
          %s299 = scalar_lea.vmem [#allocation2], %s298
          %s301 = ssub.s32 128, 128
          %302 = vsyncadd %s296, %s301
          %s303 = smul.addr %s21, 128
          %s304 = scalar_lea.hbm %s0, %s303
          %s306 = sshll.u32 %s299, 4
          %s307 = int_to_ptr.vmem [resolvable:$true] %s306
          %309 = dma.hbm_to_vmem [thread:$0]  %s304, 128, %s307, %s296
        $region44: #{position_classifier_forward.1} parent=39 // pred_fallthru
          _
        // Predicated region
        $region45: #{position_classifier_forward.1} parent=39 // pred_check
          %p310 = pneg %p67
        $region46: #{position_classifier_forward.1} parent=39 // pred_check_branch
          %312 = sbr.rel (%p310) target = $region48
        $region47: #{position_classifier_forward.1} parent=39 // pred_region
          %s313 = sand.u32 %s21, 1
          %s314 = scalar_lea.sflag [#allocation5], %s313
          %s315 = sand.u32 %s57, 1
          %s316 = smul.addr %s315, 8
          %s317 = scalar_lea.vmem [#allocation4], %s316
          %s319 = ssub.s32 128, 128
          %320 = vsyncadd %s314, %s319
          %s321 = smul.addr %s21, 128
          %s322 = scalar_lea.hbm %s1, %s321
          %s324 = sshll.u32 %s317, 4
          %s325 = int_to_ptr.vmem [resolvable:$true] %s324
          %327 = dma.hbm_to_vmem [thread:$0]  %s322, 128, %s325, %s314
        $region48: #{position_classifier_forward.1} parent=39 // pred_fallthru
          _
      $region40: #{position_classifier_forward.1} parent=5 // pred_fallthru
        _
      %p328 = scmp.le.s32.totalorder 1, %s21
      %p329 = scmp.lt.s32.totalorder %s21, 3
      %p330 = pnand %p328, %p329
      %p331 = pneg %p330
      // Predicated region
      $region49: #{position_classifier_forward.1} parent=5 // pred_check
        _
      $region50: #{position_classifier_forward.1} parent=5 // pred_check_branch
        %333 = sbr.rel (%p330) target = $region52
      $region51: #{position_classifier_forward.1} parent=5 // pred_region
        %s334 = ssub.s32 %s21, 1
        %s335 = sand.u32 %s34, 1
        %s336 = scalar_lea.sflag [#allocation3], %s335
        %s337 = sand.u32 %s34, 1
        %s338 = smul.addr %s337, 8
        %s339 = scalar_lea.vmem [#allocation2], %s338
        // Predicated region
        $region53: #{position_classifier_forward.1} parent=51 // pred_check
          %p340 = pneg %p47
        $region54: #{position_classifier_forward.1} parent=51 // pred_check_branch
          %342 = sbr.rel (%p340) target = $region56
        $region55: #{position_classifier_forward.1} parent=51 // pred_region
          %343 = dma.done %s336, 128
        $region56: #{position_classifier_forward.1} parent=51 // pred_fallthru
          _
        %s344 = sand.u32 %s26, 1
        %s345 = scalar_lea.sflag [#allocation5], %s344
        %s346 = sand.u32 %s60, 1
        %s347 = smul.addr %s346, 8
        %s348 = scalar_lea.vmem [#allocation4], %s347
        // Predicated region
        $region57: #{position_classifier_forward.1} parent=51 // pred_check
          %p349 = pneg %p73
        $region58: #{position_classifier_forward.1} parent=51 // pred_check_branch
          %351 = sbr.rel (%p349) target = $region60
        $region59: #{position_classifier_forward.1} parent=51 // pred_region
          %352 = dma.done %s345, 128
        $region60: #{position_classifier_forward.1} parent=51 // pred_fallthru
          _
        // Predicated region
        $region61: #{position_classifier_forward.1} parent=51 // pred_check
          %p353 = pneg %p94
        $region62: #{position_classifier_forward.1} parent=51 // pred_check_branch
          %355 = sbr.rel (%p353) target = $region64
        $region63: #{position_classifier_forward.1} parent=51 // pred_region
          %356 = dma.done [#allocation5], 256
        $region64: #{position_classifier_forward.1} parent=51 // pred_fallthru
          _
        // Predicated region
        $region65: #{position_classifier_forward.1} parent=51 // pred_check
          %p357 = pneg %p136
        $region66: #{position_classifier_forward.1} parent=51 // pred_check_branch
          %359 = sbr.rel (%p357) target = $region68
        $region67: #{position_classifier_forward.1} parent=51 // pred_region
          %360 = dma.done [#allocation8], 1024
        $region68: #{position_classifier_forward.1} parent=51 // pred_fallthru
          _
        // Predicated region
        $region69: #{position_classifier_forward.1} parent=51 // pred_check
          %p361 = pneg %p178
        $region70: #{position_classifier_forward.1} parent=51 // pred_check_branch
          %363 = sbr.rel (%p361) target = $region72
        $region71: #{position_classifier_forward.1} parent=51 // pred_region
          %364 = dma.done [#allocation8], 1024
        $region72: #{position_classifier_forward.1} parent=51 // pred_fallthru
          _
        %s365 = sand.u32 %s34, 1
        %s366 = scalar_lea.sflag [#allocation3], %s365
        %s367 = sand.u32 %s34, 1
        %s368 = smul.addr %s367, 8
        %s369 = scalar_lea.vmem [#allocation2], %s368
        %p370 = pneg %p47
        %p371 = pneg %p44
        %s372 = sand.u32 %s26, 1
        %s373 = scalar_lea.sflag [#allocation5], %s372
        %s374 = sand.u32 %s60, 1
        %s375 = smul.addr %s374, 8
        %s376 = scalar_lea.vmem [#allocation4], %s375
        %p377 = pneg %p73
        %p378 = pneg %p70
        %p379 = pneg %p94
        %p380 = pneg %p91
        %p381 = pneg %p115
        %p382 = pneg %p112
        %p383 = pneg %p136
        %p384 = pneg %p133
        %p385 = pneg %p157
        %p386 = pneg %p154
        %p387 = pneg %p178
        %p388 = pneg %p175
        %p389 = pneg %p199
        %p390 = pneg %p196
        %p391 = pneg %p225
        %p392 = pneg %p222
        %p393 = scmp.lt.s32.totalorder %s26, 1
        %s394 = scalar_select %p393, %s26, 1
        %s395 = smul.addr %s394, 8
        %s396 = scalar_lea.vmem %s8, %s395
        %p397 = scmp.lt.s32.totalorder %s26, 1
        %s398 = scalar_select %p397, %s26, 1
        %s399 = smul.addr %s398, 8
        %s400 = scalar_lea.vmem %s8, %s399
        %v402 = vld [vmem:[%s339] sm:$0xff]
        %v403 = vld [vmem:[%s348] sm:$0xff]
        %v404 = vsub.f32 %v402, %v403
        %v405 = vpack.c.bf16 %v404, %v404
        %v406 = vld [vmem:[#allocation6] sm:$0xf]
        %v407 = vld [vmem:[#allocation6 + $0x4] sm:$0xf]
        %v408 = vld [vmem:[#allocation6 + $0x8] sm:$0xf]
        %v409 = vld [vmem:[#allocation6 + $0xc] sm:$0xf]
        %v410 = vld [vmem:[%s3] sm:$0x1]
        %v412 = vlaneseq
        %v413 = vshrl.u32 %v412, 7
        %v414 = vsub.s32 0, %v413
        %v415 = vrot.slane %v410, %v414
        %v421 = vunpack.c.l.b16 %v406
        %v422 = vunpack.c.l.b16 %v407
        %v423 = vunpack.c.l.b16 %v408
        %v424 = vunpack.c.l.b16 %v409
        %v425 = vpack.c.b16 %v422, %v421
        %v426 = vpack.c.b16 %v424, %v423
        %vm429 = vcmask 261120
        %v431 = vsel %vm429, %v405, 0
        %433 = vmatprep.subr.bf16.mxu0 0
        %434 = vmatpush1.bf16.msra.mxu0 0
        %435 = vmatprep.subr.bf16.mxu0 0
        %436 = vmatpush1.bf16.msra.mxu0 0
        %437 = vmatprep.subr.bf16.mxu0 0
        %438 = vmatpush1.bf16.msra.mxu0 0
        %439 = vmatprep.subr.bf16.mxu0 0
        %440 = vmatpush1.bf16.msra.mxu0 0
        %441 = vmatprep.subr.bf16.mxu0 0
        %442 = vmatpush1.bf16.msra.mxu0 0
        %443 = vmatprep.subr.bf16.mxu0 0
        %444 = vmatpush1.bf16.msra.mxu0 0
        %445 = vmatprep.subr.bf16.mxu0 0
        %446 = vmatpush1.bf16.msra.mxu0 %v426
        %447 = vmatprep.subr.bf16.mxu0 0
        %448 = vmatpush1.bf16.msra.mxu0 %v425
        %449 = vmatprep.subr.bf16.mxu0 0
        %450 = vmatpush2.bf16.msra.mxu0 0
        %451 = vmatprep.subr.bf16.mxu0 0
        %452 = vmatpush2.bf16.msra.mxu0 0
        %453 = vmatprep.subr.bf16.mxu0 0
        %454 = vmatpush2.bf16.msra.mxu0 0
        %455 = vmatprep.subr.bf16.mxu0 0
        %456 = vmatpush2.bf16.msra.mxu0 0
        %457 = vmatprep.subr.bf16.mxu0 0
        %458 = vmatpush2.bf16.msra.mxu0 0
        %459 = vmatprep.subr.bf16.mxu0 0
        %460 = vmatpush2.bf16.msra.mxu0 0
        %461 = vmatprep.subr.bf16.mxu0 0
        %462 = vmatpush2.bf16.msra.mxu0 0
        %463 = vmatprep.subr.bf16.mxu0 0
        %464 = vmatpush2.bf16.msra.mxu0 0
        %465 = vmatprep.mubr.bf16.mxu0 0
        %466 = vmatmul.mubr.bf16.gmra.mxu0 %v431
        %v467 = vpop.f32.mrf.mxu0
        %v468 = vadd.f32 %v415, %v467
        %v469 = vpop.f32.mrf.mxu0
        %v470 = vpop.f32.mrf.mxu0
        %v471 = vpop.f32.mrf.mxu0
        %472 = vdwg.mxu0
        %vm473 = vcmp.gt.f32.partialorder %v468, 0.0
        %v474 = vmul.f32 %v468, 0.1
        %v475 = vsel %vm473, %v468, %v474
        %v476 = vpack.c.bf16 %v475, %v475
        %v477 = vld [vmem:[#allocation7] sm:$0xf]
        %v478 = vld [vmem:[#allocation7 + $0x4] sm:$0xf]
        %v479 = vld [vmem:[#allocation7 + $0x8] sm:$0xf]
        %v480 = vld [vmem:[#allocation7 + $0xc] sm:$0xf]
        %v481 = vld [vmem:[#allocation7 + $0x10] sm:$0xf]
        %v482 = vld [vmem:[#allocation7 + $0x14] sm:$0xf]
        %v483 = vld [vmem:[#allocation7 + $0x18] sm:$0xf]
        %v484 = vld [vmem:[#allocation7 + $0x1c] sm:$0xf]
        %v485 = vld [vmem:[#allocation7 + $0x20] sm:$0xf]
        %v486 = vld [vmem:[#allocation7 + $0x24] sm:$0xf]
        %v487 = vld [vmem:[#allocation7 + $0x28] sm:$0xf]
        %v488 = vld [vmem:[#allocation7 + $0x2c] sm:$0xf]
        %v489 = vld [vmem:[#allocation7 + $0x30] sm:$0xf]
        %v490 = vld [vmem:[#allocation7 + $0x34] sm:$0xf]
        %v491 = vld [vmem:[#allocation7 + $0x38] sm:$0xf]
        %v492 = vld [vmem:[#allocation7 + $0x3c] sm:$0xf]
        %v493 = vld [vmem:[%s5] sm:$0x1]
        %v495 = vlaneseq
        %v496 = vshrl.u32 %v495, 7
        %v497 = vsub.s32 0, %v496
        %v498 = vrot.slane %v493, %v497
        %v516 = vunpack.c.l.b16 %v477
        %v517 = vunpack.c.l.b16 %v478
        %v518 = vunpack.c.l.b16 %v479
        %v519 = vunpack.c.l.b16 %v480
        %v520 = vunpack.c.l.b16 %v481
        %v521 = vunpack.c.l.b16 %v482
        %v522 = vunpack.c.l.b16 %v483
        %v523 = vunpack.c.l.b16 %v484
        %v524 = vunpack.c.l.b16 %v485
        %v525 = vunpack.c.l.b16 %v486
        %v526 = vunpack.c.l.b16 %v487
        %v527 = vunpack.c.l.b16 %v488
        %v528 = vunpack.c.l.b16 %v489
        %v529 = vunpack.c.l.b16 %v490
        %v530 = vunpack.c.l.b16 %v491
        %v531 = vunpack.c.l.b16 %v492
        %v532 = vpack.c.b16 %v517, %v516
        %v533 = vpack.c.b16 %v519, %v518
        %v534 = vpack.c.b16 %v521, %v520
        %v535 = vpack.c.b16 %v523, %v522
        %v536 = vpack.c.b16 %v525, %v524
        %v537 = vpack.c.b16 %v527, %v526
        %v538 = vpack.c.b16 %v529, %v528
        %v539 = vpack.c.b16 %v531, %v530
        %548 = vmatprep.subr.bf16.mxu0 0
        %549 = vmatpush1.bf16.msra.mxu0 %v539
        %550 = vmatprep.subr.bf16.mxu0 0
        %551 = vmatpush1.bf16.msra.mxu0 %v538
        %552 = vmatprep.subr.bf16.mxu0 0
        %553 = vmatpush1.bf16.msra.mxu0 %v537
        %554 = vmatprep.subr.bf16.mxu0 0
        %555 = vmatpush1.bf16.msra.mxu0 %v536
        %556 = vmatprep.subr.bf16.mxu0 0
        %557 = vmatpush1.bf16.msra.mxu0 %v535
        %558 = vmatprep.subr.bf16.mxu0 0
        %559 = vmatpush1.bf16.msra.mxu0 %v534
        %560 = vmatprep.subr.bf16.mxu0 0
        %561 = vmatpush1.bf16.msra.mxu0 %v533
        %562 = vmatprep.subr.bf16.mxu0 0
        %563 = vmatpush1.bf16.msra.mxu0 %v532
        %564 = vmatprep.subr.bf16.mxu0 0
        %565 = vmatpush2.bf16.msra.mxu0 0
        %566 = vmatprep.subr.bf16.mxu0 0
        %567 = vmatpush2.bf16.msra.mxu0 0
        %568 = vmatprep.subr.bf16.mxu0 0
        %569 = vmatpush2.bf16.msra.mxu0 0
        %570 = vmatprep.subr.bf16.mxu0 0
        %571 = vmatpush2.bf16.msra.mxu0 0
        %572 = vmatprep.subr.bf16.mxu0 0
        %573 = vmatpush2.bf16.msra.mxu0 0
        %574 = vmatprep.subr.bf16.mxu0 0
        %575 = vmatpush2.bf16.msra.mxu0 0
        %576 = vmatprep.subr.bf16.mxu0 0
        %577 = vmatpush2.bf16.msra.mxu0 0
        %578 = vmatprep.subr.bf16.mxu0 0
        %579 = vmatpush2.bf16.msra.mxu0 0
        %580 = vmatprep.mubr.bf16.mxu0 0
        %581 = vmatmul.mubr.bf16.gmra.mxu0 %v476
        %v582 = vpop.f32.mrf.mxu0
        %v583 = vadd.f32 %v498, %v582
        %v584 = vpop.f32.mrf.mxu0
        %v585 = vpop.f32.mrf.mxu0
        %v586 = vpop.f32.mrf.mxu0
        %587 = vdwg.mxu0
        %vm588 = vcmp.gt.f32.partialorder %v583, 0.0
        %v589 = vmul.f32 %v583, 0.1
        %v590 = vsel %vm588, %v583, %v589
        %v591 = vpack.c.bf16 %v590, %v590
        %v592 = vld [vmem:[#allocation9] sm:$0xf]
        %v593 = vld [vmem:[#allocation9 + $0x4] sm:$0xf]
        %v594 = vld [vmem:[#allocation9 + $0x8] sm:$0xf]
        %v595 = vld [vmem:[#allocation9 + $0xc] sm:$0xf]
        %v596 = vld [vmem:[#allocation9 + $0x10] sm:$0xf]
        %v597 = vld [vmem:[#allocation9 + $0x14] sm:$0xf]
        %v598 = vld [vmem:[#allocation9 + $0x18] sm:$0xf]
        %v599 = vld [vmem:[#allocation9 + $0x1c] sm:$0xf]
        %v600 = vld [vmem:[#allocation9 + $0x20] sm:$0xf]
        %v601 = vld [vmem:[#allocation9 + $0x24] sm:$0xf]
        %v602 = vld [vmem:[#allocation9 + $0x28] sm:$0xf]
        %v603 = vld [vmem:[#allocation9 + $0x2c] sm:$0xf]
        %v604 = vld [vmem:[#allocation9 + $0x30] sm:$0xf]
        %v605 = vld [vmem:[#allocation9 + $0x34] sm:$0xf]
        %v606 = vld [vmem:[#allocation9 + $0x38] sm:$0xf]
        %v607 = vld [vmem:[#allocation9 + $0x3c] sm:$0xf]
        %v608 = vld [vmem:[%s7] sm:$0x1]
        %v610 = vlaneseq
        %v611 = vshrl.u32 %v610, 7
        %v612 = vsub.s32 0, %v611
        %v613 = vrot.slane %v608, %v612
        %v631 = vunpack.c.l.b16 %v592
        %v632 = vunpack.c.l.b16 %v593
        %v633 = vunpack.c.l.b16 %v594
        %v634 = vunpack.c.l.b16 %v595
        %v635 = vunpack.c.l.b16 %v596
        %v636 = vunpack.c.l.b16 %v597
        %v637 = vunpack.c.l.b16 %v598
        %v638 = vunpack.c.l.b16 %v599
        %v639 = vunpack.c.l.b16 %v600
        %v640 = vunpack.c.l.b16 %v601
        %v641 = vunpack.c.l.b16 %v602
        %v642 = vunpack.c.l.b16 %v603
        %v643 = vunpack.c.l.b16 %v604
        %v644 = vunpack.c.l.b16 %v605
        %v645 = vunpack.c.l.b16 %v606
        %v646 = vunpack.c.l.b16 %v607
        %v647 = vpack.c.b16 %v632, %v631
        %v648 = vpack.c.b16 %v634, %v633
        %v649 = vpack.c.b16 %v636, %v635
        %v650 = vpack.c.b16 %v638, %v637
        %v651 = vpack.c.b16 %v640, %v639
        %v652 = vpack.c.b16 %v642, %v641
        %v653 = vpack.c.b16 %v644, %v643
        %v654 = vpack.c.b16 %v646, %v645
        %663 = vmatprep.subr.bf16.mxu0 0
        %664 = vmatpush1.bf16.msra.mxu0 %v654
        %665 = vmatprep.subr.bf16.mxu0 0
        %666 = vmatpush1.bf16.msra.mxu0 %v653
        %667 = vmatprep.subr.bf16.mxu0 0
        %668 = vmatpush1.bf16.msra.mxu0 %v652
        %669 = vmatprep.subr.bf16.mxu0 0
        %670 = vmatpush1.bf16.msra.mxu0 %v651
        %671 = vmatprep.subr.bf16.mxu0 0
        %672 = vmatpush1.bf16.msra.mxu0 %v650
        %673 = vmatprep.subr.bf16.mxu0 0
        %674 = vmatpush1.bf16.msra.mxu0 %v649
        %675 = vmatprep.subr.bf16.mxu0 0
        %676 = vmatpush1.bf16.msra.mxu0 %v648
        %677 = vmatprep.subr.bf16.mxu0 0
        %678 = vmatpush1.bf16.msra.mxu0 %v647
        %679 = vmatprep.subr.bf16.mxu0 0
        %680 = vmatpush2.bf16.msra.mxu0 0
        %681 = vmatprep.subr.bf16.mxu0 0
        %682 = vmatpush2.bf16.msra.mxu0 0
        %683 = vmatprep.subr.bf16.mxu0 0
        %684 = vmatpush2.bf16.msra.mxu0 0
        %685 = vmatprep.subr.bf16.mxu0 0
        %686 = vmatpush2.bf16.msra.mxu0 0
        %687 = vmatprep.subr.bf16.mxu0 0
        %688 = vmatpush2.bf16.msra.mxu0 0
        %689 = vmatprep.subr.bf16.mxu0 0
        %690 = vmatpush2.bf16.msra.mxu0 0
        %691 = vmatprep.subr.bf16.mxu0 0
        %692 = vmatpush2.bf16.msra.mxu0 0
        %693 = vmatprep.subr.bf16.mxu0 0
        %694 = vmatpush2.bf16.msra.mxu0 0
        %695 = vmatprep.mubr.bf16.mxu0 0
        %696 = vmatmul.mubr.bf16.gmra.mxu0 %v591
        %v697 = vpop.f32.mrf.mxu0
        %v698 = vadd.f32 %v613, %v697
        %v699 = vpop.f32.mrf.mxu0
        %v700 = vpop.f32.mrf.mxu0
        %v701 = vpop.f32.mrf.mxu0
        %702 = vdwg.mxu0
        %vm703 = vcmask 64512
        %704 = vst.msk [vmem:[%s400] sm:$0xff] %vm703, %v698
        %p705 = scmp.lt.s32.totalorder %s26, 1
        %s706 = scalar_select %p705, %s26, 1
        %s707 = smul.addr %s706, 8
        %s708 = scalar_lea.vmem %s8, %s707
        // Predicated region
        $region73: #{position_classifier_forward.1} parent=51 // pred_check
          %p709 = pneg %p222
        $region74: #{position_classifier_forward.1} parent=51 // pred_check_branch
          %711 = sbr.rel (%p709) target = $region76
        $region75: #{position_classifier_forward.1} parent=51 // pred_region
          _
        $region76: #{position_classifier_forward.1} parent=51 // pred_fallthru
          _
      $region52: #{position_classifier_forward.1} parent=5 // pred_fallthru
        _
      %p712 = scmp.le.s32.totalorder 2, %s21
      // Predicated region
      $region77: #{position_classifier_forward.1} parent=5 // pred_check
        %p713 = pneg %p712
      $region78: #{position_classifier_forward.1} parent=5 // pred_check_branch
        %715 = sbr.rel (%p713) target = $region80
      $region79: #{position_classifier_forward.1} parent=5 // pred_region
        %s716 = ssub.s32 %s21, 2
        // Predicated region
        $region81: #{position_classifier_forward.1} parent=79 // pred_check
          %p717 = pneg %p228
        $region82: #{position_classifier_forward.1} parent=79 // pred_check_branch
          %719 = sbr.rel (%p717) target = $region84
        $region83: #{position_classifier_forward.1} parent=79 // pred_region
          %p720 = scmp.lt.s32.totalorder %s27, 1
          %s721 = scalar_select %p720, %s27, 1
          %s722 = smul.addr %s721, 8
          %s723 = scalar_lea.vmem %s8, %s722
        $region84: #{position_classifier_forward.1} parent=79 // pred_fallthru
          _
      $region80: #{position_classifier_forward.1} parent=5 // pred_fallthru
        _
    $region6: #{position_classifier_forward.1} parent=1 // loop_footer
      %s25 = sadd.s32 1, %s21
    $region7: #{position_classifier_forward.1} parent=1 // loop_footer_branch
      %20 = sbr.rel target = $region3
    $region8: #{position_classifier_forward.1} parent=1 // loop_exit
      _
    %724 = vsyncpa [#allocation3], 1
    %s725 = scalar_lea.sflag [#allocation3], 1
    %726 = vsyncpa %s725, 1
    %727 = vsyncpa [#allocation5], 1
    %s728 = scalar_lea.sflag [#allocation5], 1
    %729 = vsyncpa %s728, 1
    %730 = vsyncpa [#allocation8], 1

</llo_original>
